<compile_context>
chip_gen: v6e
topology: v6e:2x2x1
jax: 0.10.0
libtpu: 0.0.40
codegen_flags: <defaults>
</compile_context>

<pallas_src>
import jax
import jax.numpy as jnp
from jax.experimental import pallas as pl
from jax.experimental.pallas import tpu as pltpu


def similarity_kernel(cls_ref, s1_ref, s2_ref,
                      w1_ref, b1_ref, w2_ref, b2_ref,
                      out_ref):
    D = s1_ref.shape[-1]          # true embed dim (200); w1/b1/w2 are padded to 256

    # --- Dense 768 -> D_pad, bias, ReLU: bf16 MXU operands, f32 accumulate ----
    h = jnp.dot(cls_ref[...], w1_ref[...],
                preferred_element_type=jnp.float32)                 # MXU, [B, 256]
    h = jnp.maximum(h + b1_ref[...], 0.0)                           # VPU (f32)

    # --- Word means (T is static -> compile-time 1/T scalar multiply) ---------
    s1_mean = jnp.mean(s1_ref[...], axis=1)                         # [B, D]
    s2_mean = jnp.mean(s2_ref[...], axis=1)                         # [B, D]

    # --- Output layer, fused:
    #     concat([h, m1, m2]) @ W2 + b2  ==  per-segment VPU multiply + lane
    #     reduction against row-indexed [3, 256] weights (no N=1 MXU matmuls,
    #     no lane-unaligned slices -- row index is a free sublane offset).
    # h segment uses all 256 lanes (padding of h, b1, w2 row 0 is zero).
    logits = (jnp.sum(h * w2_ref[0:1, :], axis=-1, keepdims=True)
              + jnp.sum(s1_mean * w2_ref[1:2, :D], axis=-1, keepdims=True)
              + jnp.sum(s2_mean * w2_ref[2:3, :D], axis=-1, keepdims=True)
              + b2_ref[0])                                          # [B, 1]

    # TODO(synk): dropout before the output layer is treated as identity (eval).
    out_ref[...] = jax.nn.sigmoid(logits)                           # EUP
    # NOTE: (B, 1) output is a masked store; make it lane-dense (1, B) if B grows.


def pack_params(params, d_pad=256):
    """One-time packing of torch-layout params into kernel-friendly tensors.

    Zero-pads the embed dim from D (200) to d_pad (256) so all weight lanes are
    128-aligned; padding contributes exactly zero to every dot product.
    """
    H, D = params["w1"].shape                                        # [768, D]
    w1 = jnp.zeros((H, d_pad), jnp.bfloat16)
    w1 = w1.at[:, :D].set(params["w1"].astype(jnp.bfloat16))         # [768, 256] bf16
    b1 = jnp.zeros((1, d_pad), jnp.float32)
    b1 = b1.at[:, :D].set(params["b1"].reshape(1, -1).astype(jnp.float32))
    w2_flat = params["w2"].reshape(-1).astype(jnp.float32)           # [3D] = [h|s1|s2]
    w2 = jnp.zeros((3, d_pad), jnp.float32)
    w2 = w2.at[:, :D].set(w2_flat.reshape(3, D))                     # row-indexed
    b2 = params["b2"].reshape(1).astype(jnp.float32)                 # [1] (SMEM)
    return {"w1": w1, "b1": b1, "w2": w2, "b2": b2, "d": D}


@jax.jit
def similarity_forward(last_hidden_state, s1_words, s2_words, packed):
    B, S, H = last_hidden_state.shape
    D = s1_words.shape[-1]
    D_pad = packed["b1"].shape[-1]
    T1, T2 = s1_words.shape[1], s2_words.shape[1]

    # CLS-only fetch + bf16: the kernel never touches the full [B, S, H] block.
    cls = last_hidden_state[:, 0, :].astype(jnp.bfloat16)            # [B, 768] bf16

    vmem = pl.BlockSpec(memory_space=pltpu.MemorySpace.VMEM)
    smem = pl.BlockSpec(memory_space=pltpu.MemorySpace.SMEM)

    # Advisory cost hint so XLA schedules sensibly around the custom call.
    flops = 2 * B * H * D_pad + 2 * B * (T1 + T2) * D + 2 * B * (D_pad + 2 * D)
    bytes_accessed = (2 * cls.size                       # bf16 CLS rows
                      + 4 * s1_words.size + 4 * s2_words.size
                      + 2 * packed["w1"].size            # bf16 dense weight
                      + 4 * packed["b1"].size + 4 * packed["w2"].size
                      + 4 + 4 * B)

    return pl.pallas_call(
        similarity_kernel,
        out_shape=jax.ShapeDtypeStruct((B, 1), jnp.float32),
        in_specs=[vmem, vmem, vmem, vmem, vmem, vmem, smem],
        out_specs=vmem,
        cost_estimate=pl.CostEstimate(flops=flops, transcendentals=B,
                                      bytes_accessed=bytes_accessed),
    )(cls, s1_words, s2_words,
      packed["w1"], packed["b1"], packed["w2"], packed["b2"])


def init_params(key, hidden=768, embed_dim=200):
    k1, k2, k3, k4 = jax.random.split(key, 4)
    return {
        "w1": jax.random.normal(k1, (hidden, embed_dim), jnp.float32) * 0.02,
        "b1": jax.random.normal(k2, (embed_dim,), jnp.float32) * 0.02,
        "w2": jax.random.normal(k3, (embed_dim * 3, 1), jnp.float32) * 0.02,
        "b2": jax.random.normal(k4, (1,), jnp.float32) * 0.02,
    }


if __name__ == "__main__":
    key = jax.random.PRNGKey(0)
    kp, kh, k1, k2 = jax.random.split(key, 4)

    B, S, H, D, T = 2, 8, 768, 200, 6
    params = init_params(kp, hidden=H, embed_dim=D)

    # Synthetic stand-in for bert(input_ids, attention_mask).last_hidden_state
    last_hidden_state = jax.random.normal(kh, (B, S, H), jnp.float32)
    s1_words = jax.random.normal(k1, (B, T, D), jnp.float32)
    s2_words = jax.random.normal(k2, (B, T, D), jnp.float32)

    packed = pack_params(params)
    out = similarity_forward(last_hidden_state, s1_words, s2_words, packed)
    out = jax.block_until_ready(out)

    # Pure-JAX f32 reference implementing the original module's math.
    cls = last_hidden_state[:, 0, :]
    h_ref = jnp.maximum(cls @ params["w1"] + params["b1"], 0.0)
    comb = jnp.concatenate([h_ref, s1_words.mean(1), s2_words.mean(1)], axis=1)
    ref = jax.nn.sigmoid(comb @ params["w2"] + params["b2"])

    assert out.shape == (B, 1)
    # cls / w1 are fed to the MXU in bf16 (f32 accumulate) -> looser tolerance.
    assert jnp.allclose(out, ref, atol=1e-2, rtol=1e-2)

    print("KERNEL_OK")
</pallas_src>

<mosaic_0001>
module attributes {stable_mosaic.version = 11 : i64} {
  func.func @similarity_kernel(%arg0: memref<2x768xbf16, #tpu.memory_space<vmem>>, %arg1: memref<2x6x200xf32, #tpu.memory_space<vmem>>, %arg2: memref<2x6x200xf32, #tpu.memory_space<vmem>>, %arg3: memref<768x256xbf16, #tpu.memory_space<vmem>>, %arg4: memref<1x256xf32, #tpu.memory_space<vmem>>, %arg5: memref<3x256xf32, #tpu.memory_space<vmem>>, %arg6: memref<1xf32, #tpu.memory_space<smem>>, %arg7: memref<2x1xf32, #tpu.memory_space<vmem>>) attributes {dimension_semantics = [], scalar_prefetch = 0 : i64, scratch_operands = 0 : i64, tpu.core_type = #tpu.core_type<tc>} {
    %c0 = arith.constant 0 : index
    %c0_0 = arith.constant 0 : index
    %0 = vector.load %arg0[%c0, %c0_0] : memref<2x768xbf16, #tpu.memory_space<vmem>>, vector<2x768xbf16>
    %c0_1 = arith.constant 0 : index
    %c0_2 = arith.constant 0 : index
    %1 = vector.load %arg3[%c0_1, %c0_2] : memref<768x256xbf16, #tpu.memory_space<vmem>>, vector<768x256xbf16>
    %cst = arith.constant dense<0.000000e+00> : vector<2x256xf32>
    %2 = tpu.matmul %0, %1, %cst {dimension_numbers = #tpu.dot_dimension_numbers<[1], [0], [0], [1], [0, 0, 1, 1], [], []>} : vector<2x768xbf16>, vector<768x256xbf16>, vector<2x256xf32> -> vector<2x256xf32>
    %c0_3 = arith.constant 0 : index
    %c0_4 = arith.constant 0 : index
    %3 = vector.load %arg4[%c0_3, %c0_4] : memref<1x256xf32, #tpu.memory_space<vmem>>, vector<1x256xf32>
    %4 = vector.broadcast %3 : vector<1x256xf32> to vector<2x256xf32>
    %5 = arith.addf %2, %4 : vector<2x256xf32>
    %cst_5 = arith.constant 0.000000e+00 : f32
    %6 = vector.broadcast %cst_5 : f32 to vector<2x256xf32>
    %7 = arith.maximumf %5, %6 : vector<2x256xf32>
    %c0_6 = arith.constant 0 : index
    %c0_7 = arith.constant 0 : index
    %c0_8 = arith.constant 0 : index
    %8 = vector.load %arg1[%c0_6, %c0_7, %c0_8] : memref<2x6x200xf32, #tpu.memory_space<vmem>>, vector<2x6x200xf32>
    %cst_9 = arith.constant dense<0.000000e+00> : vector<2x200xf32>
    %9 = vector.multi_reduction <add>, %8, %cst_9 [1] : vector<2x6x200xf32> to vector<2x200xf32>
    %cst_10 = arith.constant 6.000000e+00 : f32
    %10 = vector.broadcast %cst_10 : f32 to vector<2x200xf32>
    %11 = arith.divf %9, %10 : vector<2x200xf32>
    %c0_11 = arith.constant 0 : index
    %c0_12 = arith.constant 0 : index
    %c0_13 = arith.constant 0 : index
    %12 = vector.load %arg2[%c0_11, %c0_12, %c0_13] : memref<2x6x200xf32, #tpu.memory_space<vmem>>, vector<2x6x200xf32>
    %cst_14 = arith.constant dense<0.000000e+00> : vector<2x200xf32>
    %13 = vector.multi_reduction <add>, %12, %cst_14 [1] : vector<2x6x200xf32> to vector<2x200xf32>
    %cst_15 = arith.constant 6.000000e+00 : f32
    %14 = vector.broadcast %cst_15 : f32 to vector<2x200xf32>
    %15 = arith.divf %13, %14 : vector<2x200xf32>
    %c0_16 = arith.constant 0 : index
    %c0_17 = arith.constant 0 : index
    %16 = vector.load %arg5[%c0_16, %c0_17] : memref<3x256xf32, #tpu.memory_space<vmem>>, vector<1x256xf32>
    %17 = vector.broadcast %16 : vector<1x256xf32> to vector<2x256xf32>
    %18 = arith.mulf %7, %17 : vector<2x256xf32>
    %cst_18 = arith.constant dense<0.000000e+00> : vector<2xf32>
    %19 = vector.multi_reduction <add>, %18, %cst_18 [1] : vector<2x256xf32> to vector<2xf32>
    %20 = vector.shape_cast %19 : vector<2xf32> to vector<2x1xf32>
    %c1 = arith.constant 1 : index
    %c0_19 = arith.constant 0 : index
    %21 = vector.load %arg5[%c1, %c0_19] : memref<3x256xf32, #tpu.memory_space<vmem>>, vector<1x200xf32>
    %22 = vector.broadcast %21 : vector<1x200xf32> to vector<2x200xf32>
    %23 = arith.mulf %11, %22 : vector<2x200xf32>
    %cst_20 = arith.constant dense<0.000000e+00> : vector<2xf32>
    %24 = vector.multi_reduction <add>, %23, %cst_20 [1] : vector<2x200xf32> to vector<2xf32>
    %25 = vector.shape_cast %24 : vector<2xf32> to vector<2x1xf32>
    %26 = arith.addf %20, %25 : vector<2x1xf32>
    %c2 = arith.constant 2 : index
    %c0_21 = arith.constant 0 : index
    %27 = vector.load %arg5[%c2, %c0_21] : memref<3x256xf32, #tpu.memory_space<vmem>>, vector<1x200xf32>
    %28 = vector.broadcast %27 : vector<1x200xf32> to vector<2x200xf32>
    %29 = arith.mulf %15, %28 : vector<2x200xf32>
    %cst_22 = arith.constant dense<0.000000e+00> : vector<2xf32>
    %30 = vector.multi_reduction <add>, %29, %cst_22 [1] : vector<2x200xf32> to vector<2xf32>
    %31 = vector.shape_cast %30 : vector<2xf32> to vector<2x1xf32>
    %32 = arith.addf %26, %31 : vector<2x1xf32>
    %c0_23 = arith.constant 0 : index
    %33 = memref.load %arg6[%c0_23] : memref<1xf32, #tpu.memory_space<smem>>
    %34 = vector.broadcast %33 : f32 to vector<2x1xf32>
    %35 = arith.addf %32, %34 : vector<2x1xf32>
    %36 = arith.negf %35 : vector<2x1xf32>
    %37 = math.exp %36 : vector<2x1xf32>
    %cst_24 = arith.constant 1.000000e+00 : f32
    %38 = vector.broadcast %cst_24 : f32 to vector<2x1xf32>
    %39 = arith.addf %38, %37 : vector<2x1xf32>
    %40 = arith.divf %38, %39 : vector<2x1xf32>
    %c0_25 = arith.constant 0 : index
    %c0_26 = arith.constant 0 : index
    %41 = vector.load %arg7[%c0_25, %c0_26] : memref<2x1xf32, #tpu.memory_space<vmem>>, vector<2x1xf32>
    tpu.vector_store %arg7[%c0_25, %c0_26], %40 {strides = array<i32>} : memref<2x1xf32, #tpu.memory_space<vmem>>, vector<2x1xf32>,
    return
  }
}

</mosaic_0001>

<llo_original>
// kernel: similarity_forward.1
$region0: #{similarity_forward.1}
  #allocation0 [shape = 'u32[]', space=smem, size = 0x4, offset = 0x4, fixed_abs, tag = 'smem constant byte address 0x4 - core index']
  #allocation1 [shape = 'u32[144,128]{1,0:T(1,128)}', space=vmem, size = 0x12000, scoped, tag = 'internal scratch']
  #allocation2 [shape = 'f32[1]{0:T(128)S(6)}', space=smem, size = 0x200, scoped, tag = 'scoped memory for similarity_forward.1']
  %s0 = inlined_call_operand.vmem [shape: bf16[2,768], index: 0, kind: input, shape index: {}]
  %s1 = inlined_call_operand.vmem [shape: f32[2,6,200], index: 1, kind: input, shape index: {}]
  %s2 = inlined_call_operand.vmem [shape: f32[2,6,200], index: 2, kind: input, shape index: {}]
  %s3 = inlined_call_operand.hbm [shape: bf16[768,256], index: 3, kind: input, shape index: {}]
  %s4 = inlined_call_operand.vmem [shape: f32[1,256], index: 4, kind: input, shape index: {}]
  %s5 = inlined_call_operand.vmem [shape: f32[3,256], index: 5, kind: input, shape index: {}]
  %s6 = inlined_call_operand.<no memory space> [shape: f32[1], index: 6, kind: input, shape index: {}]
  %s7 = inlined_call_operand.vmem [shape: f32[2,1], index: 7, kind: output, shape index: {}]
  %s8 = sld [smem:[#allocation0]]
  $region42: #{similarity_forward.1} parent=0
    _
  %s10 = ssub.s32 1, %s8
  %s11 = scalar_select 0, %s10, %s8
  %12 = sst [smem:[#allocation2]] %s6
  $region1: #{similarity_forward.1} parent=0
    #allocation3 [shape = 'u8[393216]{0}', space=vmem, size = 0x60000, scoped, tag = 'input window, operand 3, single buffered']
    #allocation4 [shape = 's32[1]{0}', space=sflag, size = 0x4, scoped, tag = 'scoped memory for similarity_forward.1']
    %13 = vsyncpa [#allocation4], 0
    // Predicated region
    $region2: #{similarity_forward.1} parent=1 // pred_check
      _
    $region3: #{similarity_forward.1} parent=1 // pred_check_branch
      %15 = sbr.rel (0) target = $region5
    $region4: #{similarity_forward.1} parent=1 // pred_region
      _
    $region5: #{similarity_forward.1} parent=1 // pred_fallthru
      _
    // Predicated region
    $region6: #{similarity_forward.1} parent=1 // pred_check
      _
    $region7: #{similarity_forward.1} parent=1 // pred_check_branch
      %17 = sbr.rel (0) target = $region9
    $region8: #{similarity_forward.1} parent=1 // pred_region
      _
    $region9: #{similarity_forward.1} parent=1 // pred_fallthru
      _
    // Predicated region
    $region10: #{similarity_forward.1} parent=1 // pred_check
      _
    $region11: #{similarity_forward.1} parent=1 // pred_check_branch
      %19 = sbr.rel (0) target = $region13
    $region12: #{similarity_forward.1} parent=1 // pred_region
      _
    $region13: #{similarity_forward.1} parent=1 // pred_fallthru
      _
    // Predicated region
    $region14: #{similarity_forward.1} parent=1 // pred_check
      _
    $region15: #{similarity_forward.1} parent=1 // pred_check_branch
      %21 = sbr.rel (0) target = $region17
    $region16: #{similarity_forward.1} parent=1 // pred_region
      %s23 = ssub.s32 12288, 12288
      %24 = vsyncadd [#allocation4], %s23
      %s25 = sshll.u32 [#allocation3], 4
      %s26 = int_to_ptr.vmem [resolvable:$true] %s25
      %31 = dma.hbm_to_vmem [thread:$0]  %s3, 12288, %s26, [#allocation4], 128, 128, 8
    $region17: #{similarity_forward.1} parent=1 // pred_fallthru
      _
    // Predicated region
    $region18: #{similarity_forward.1} parent=1 // pred_check
      _
    $region19: #{similarity_forward.1} parent=1 // pred_check_branch
      %33 = sbr.rel (0) target = $region21
    $region20: #{similarity_forward.1} parent=1 // pred_region
      _
    $region21: #{similarity_forward.1} parent=1 // pred_fallthru
      _
    // Predicated region
    $region22: #{similarity_forward.1} parent=1 // pred_check
      _
    $region23: #{similarity_forward.1} parent=1 // pred_check_branch
      %35 = sbr.rel (0) target = $region25
    $region24: #{similarity_forward.1} parent=1 // pred_region
      _
    $region25: #{similarity_forward.1} parent=1 // pred_fallthru
      _
    // Predicated region
    $region26: #{similarity_forward.1} parent=1 // pred_check
      _
    $region27: #{similarity_forward.1} parent=1 // pred_check_branch
      %37 = sbr.rel (0) target = $region29
    $region28: #{similarity_forward.1} parent=1 // pred_region
      _
    $region29: #{similarity_forward.1} parent=1 // pred_fallthru
      _
    // Predicated region
    $region30: #{similarity_forward.1} parent=1 // pred_check
      _
    $region31: #{similarity_forward.1} parent=1 // pred_check_branch
      %39 = sbr.rel (0) target = $region33
    $region32: #{similarity_forward.1} parent=1 // pred_region
      %40 = dma.done [#allocation4], 12288
    $region33: #{similarity_forward.1} parent=1 // pred_fallthru
      _
    %v41 = vld [vmem:[%s0] sm:$0x3f]
    %v42 = vld [vmem:[#allocation3] sm:$0xff]
    %v43 = vld [vmem:[#allocation3 + $0x8] sm:$0xff]
    %v44 = vld [vmem:[#allocation3 + $0x10] sm:$0xff]
    %v45 = vld [vmem:[#allocation3 + $0x18] sm:$0xff]
    %v46 = vld [vmem:[#allocation3 + $0x20] sm:$0xff]
    %v47 = vld [vmem:[#allocation3 + $0x28] sm:$0xff]
    %v48 = vld [vmem:[#allocation3 + $0x30] sm:$0xff]
    %v49 = vld [vmem:[#allocation3 + $0x38] sm:$0xff]
    %v50 = vld [vmem:[#allocation3 + $0x40] sm:$0xff]
    %v51 = vld [vmem:[#allocation3 + $0x48] sm:$0xff]
    %v52 = vld [vmem:[#allocation3 + $0x50] sm:$0xff]
    %v53 = vld [vmem:[#allocation3 + $0x58] sm:$0xff]
    %v54 = vld [vmem:[#allocation3 + $0x60] sm:$0xff]
    %v55 = vld [vmem:[#allocation3 + $0x68] sm:$0xff]
    %v56 = vld [vmem:[#allocation3 + $0x70] sm:$0xff]
    %v57 = vld [vmem:[#allocation3 + $0x78] sm:$0xff]
    %v58 = vld [vmem:[#allocation3 + $0x80] sm:$0xff]
    %v59 = vld [vmem:[#allocation3 + $0x88] sm:$0xff]
    %v60 = vld [vmem:[#allocation3 + $0x90] sm:$0xff]
    %v61 = vld [vmem:[#allocation3 + $0x98] sm:$0xff]
    %v62 = vld [vmem:[#allocation3 + $0xa0] sm:$0xff]
    %v63 = vld [vmem:[#allocation3 + $0xa8] sm:$0xff]
    %v64 = vld [vmem:[#allocation3 + $0xb0] sm:$0xff]
    %v65 = vld [vmem:[#allocation3 + $0xb8] sm:$0xff]
    %v66 = vld [vmem:[#allocation3 + $0xc0] sm:$0xff]
    %v67 = vld [vmem:[#allocation3 + $0xc8] sm:$0xff]
    %v68 = vld [vmem:[#allocation3 + $0xd0] sm:$0xff]
    %v69 = vld [vmem:[#allocation3 + $0xd8] sm:$0xff]
    %v70 = vld [vmem:[#allocation3 + $0xe0] sm:$0xff]
    %v71 = vld [vmem:[#allocation3 + $0xe8] sm:$0xff]
    %v72 = vld [vmem:[#allocation3 + $0xf0] sm:$0xff]
    %v73 = vld [vmem:[#allocation3 + $0xf8] sm:$0xff]
    %v74 = vld [vmem:[#allocation3 + $0x100] sm:$0xff]
    %v75 = vld [vmem:[#allocation3 + $0x108] sm:$0xff]
    %v76 = vld [vmem:[#allocation3 + $0x110] sm:$0xff]
    %v77 = vld [vmem:[#allocation3 + $0x118] sm:$0xff]
    %v78 = vld [vmem:[#allocation3 + $0x120] sm:$0xff]
    %v79 = vld [vmem:[#allocation3 + $0x128] sm:$0xff]
    %v80 = vld [vmem:[#allocation3 + $0x130] sm:$0xff]
    %v81 = vld [vmem:[#allocation3 + $0x138] sm:$0xff]
    %v82 = vld [vmem:[#allocation3 + $0x140] sm:$0xff]
    %v83 = vld [vmem:[#allocation3 + $0x148] sm:$0xff]
    %v84 = vld [vmem:[#allocation3 + $0x150] sm:$0xff]
    %v85 = vld [vmem:[#allocation3 + $0x158] sm:$0xff]
    %v86 = vld [vmem:[#allocation3 + $0x160] sm:$0xff]
    %v87 = vld [vmem:[#allocation3 + $0x168] sm:$0xff]
    %v88 = vld [vmem:[#allocation3 + $0x170] sm:$0xff]
    %v89 = vld [vmem:[#allocation3 + $0x178] sm:$0xff]
    %v90 = vld [vmem:[#allocation3 + $0x180] sm:$0xff]
    %v91 = vld [vmem:[#allocation3 + $0x188] sm:$0xff]
    %v92 = vld [vmem:[#allocation3 + $0x190] sm:$0xff]
    %v93 = vld [vmem:[#allocation3 + $0x198] sm:$0xff]
    %v94 = vld [vmem:[#allocation3 + $0x1a0] sm:$0xff]
    %v95 = vld [vmem:[#allocation3 + $0x1a8] sm:$0xff]
    %v96 = vld [vmem:[#allocation3 + $0x1b0] sm:$0xff]
    %v97 = vld [vmem:[#allocation3 + $0x1b8] sm:$0xff]
    %v98 = vld [vmem:[#allocation3 + $0x1c0] sm:$0xff]
    %v99 = vld [vmem:[#allocation3 + $0x1c8] sm:$0xff]
    %v100 = vld [vmem:[#allocation3 + $0x1d0] sm:$0xff]
    %v101 = vld [vmem:[#allocation3 + $0x1d8] sm:$0xff]
    %v102 = vld [vmem:[#allocation3 + $0x1e0] sm:$0xff]
    %v103 = vld [vmem:[#allocation3 + $0x1e8] sm:$0xff]
    %v104 = vld [vmem:[#allocation3 + $0x1f0] sm:$0xff]
    %v105 = vld [vmem:[#allocation3 + $0x1f8] sm:$0xff]
    %v106 = vld [vmem:[#allocation3 + $0x200] sm:$0xff]
    %v107 = vld [vmem:[#allocation3 + $0x208] sm:$0xff]
    %v108 = vld [vmem:[#allocation3 + $0x210] sm:$0xff]
    %v109 = vld [vmem:[#allocation3 + $0x218] sm:$0xff]
    %v110 = vld [vmem:[#allocation3 + $0x220] sm:$0xff]
    %v111 = vld [vmem:[#allocation3 + $0x228] sm:$0xff]
    %v112 = vld [vmem:[#allocation3 + $0x230] sm:$0xff]
    %v113 = vld [vmem:[#allocation3 + $0x238] sm:$0xff]
    %v114 = vld [vmem:[#allocation3 + $0x240] sm:$0xff]
    %v115 = vld [vmem:[#allocation3 + $0x248] sm:$0xff]
    %v116 = vld [vmem:[#allocation3 + $0x250] sm:$0xff]
    %v117 = vld [vmem:[#allocation3 + $0x258] sm:$0xff]
    %v118 = vld [vmem:[#allocation3 + $0x260] sm:$0xff]
    %v119 = vld [vmem:[#allocation3 + $0x268] sm:$0xff]
    %v120 = vld [vmem:[#allocation3 + $0x270] sm:$0xff]
    %v121 = vld [vmem:[#allocation3 + $0x278] sm:$0xff]
    %v122 = vld [vmem:[#allocation3 + $0x280] sm:$0xff]
    %v123 = vld [vmem:[#allocation3 + $0x288] sm:$0xff]
    %v124 = vld [vmem:[#allocation3 + $0x290] sm:$0xff]
    %v125 = vld [vmem:[#allocation3 + $0x298] sm:$0xff]
    %v126 = vld [vmem:[#allocation3 + $0x2a0] sm:$0xff]
    %v127 = vld [vmem:[#allocation3 + $0x2a8] sm:$0xff]
    %v128 = vld [vmem:[#allocation3 + $0x2b0] sm:$0xff]
    %v129 = vld [vmem:[#allocation3 + $0x2b8] sm:$0xff]
    %v130 = vld [vmem:[#allocation3 + $0x2c0] sm:$0xff]
    %v131 = vld [vmem:[#allocation3 + $0x2c8] sm:$0xff]
    %v132 = vld [vmem:[#allocation3 + $0x2d0] sm:$0xff]
    %v133 = vld [vmem:[#allocation3 + $0x2d8] sm:$0xff]
    %v134 = vld [vmem:[#allocation3 + $0x2e0] sm:$0xff]
    %v135 = vld [vmem:[#allocation3 + $0x2e8] sm:$0xff]
    %v136 = vld [vmem:[#allocation3 + $0x2f0] sm:$0xff]
    %v137 = vld [vmem:[#allocation3 + $0x2f8] sm:$0xff]
    %v138 = vld [vmem:[%s4] sm:$0x3]
    %v140 = vlaneseq
    %v141 = vshrl.u32 %v140, 7
    %v142 = vsub.s32 0, %v141
    %v143 = vrot.slane %v138, %v142
    %v144 = vlaneseq
    %v145 = vshrl.u32 %v144, 7
    %v146 = vsub.s32 1, %v145
    %v147 = vrot.slane %v138, %v146
    %v151 = vcombine.high %v41, %v41
    %v153 = vunpack.c.l.s4 1966171168
    %v154 = vunpack.c.0.s8 %v153
    %v155 = vlaneseq
    %v156 = vshrl.u32 %v155, 7
    %v157 = vsub.s32 %v154, %v156
    %v158 = vrot.slane %v41, %v157
    %v160 = vunpack.c.l.s4 1966171168
    %v161 = vunpack.c.0.s8 %v160
    %v162 = vlaneseq
    %v163 = vshrl.u32 %v162, 7
    %v164 = vsub.s32 %v161, %v163
    %v165 = vrot.slane %v151, %v164
    %v166 = vcombine.high %v158, %v158
    %v167 = vcombine.high %v165, %v165
    %v169 = vunpack.c.l.s4 1966171168
    %v170 = vunpack.c.0.s8 %v169
    %v171 = vlaneseq
    %v172 = vshrl.u32 %v171, 7
    %v173 = vsub.s32 %v170, %v172
    %v174 = vrot.slane %v158, %v173
    %v176 = vunpack.c.l.s4 1966171168
    %v177 = vunpack.c.0.s8 %v176
    %v178 = vlaneseq
    %v179 = vshrl.u32 %v178, 7
    %v180 = vsub.s32 %v177, %v179
    %v181 = vrot.slane %v165, %v180
    %v183 = vunpack.c.l.s4 1966171168
    %v184 = vunpack.c.0.s8 %v183
    %v185 = vlaneseq
    %v186 = vshrl.u32 %v185, 7
    %v187 = vsub.s32 %v184, %v186
    %v188 = vrot.slane %v166, %v187
    %v190 = vunpack.c.l.s4 1966171168
    %v191 = vunpack.c.0.s8 %v190
    %v192 = vlaneseq
    %v193 = vshrl.u32 %v192, 7
    %v194 = vsub.s32 %v191, %v193
    %v195 = vrot.slane %v167, %v194
    %v196 = vcombine.high %v174, %v174
    %v197 = vcombine.high %v188, %v188
    %v300 = vunpack.c.l.b16 %v42
    %v301 = vunpack.c.h.b16 %v42
    %v302 = vunpack.c.l.b16 %v43
    %v303 = vunpack.c.h.b16 %v43
    %v304 = vunpack.c.l.b16 %v44
    %v305 = vunpack.c.h.b16 %v44
    %v306 = vunpack.c.l.b16 %v45
    %v307 = vunpack.c.h.b16 %v45
    %v308 = vunpack.c.l.b16 %v46
    %v309 = vunpack.c.h.b16 %v46
    %v310 = vunpack.c.l.b16 %v47
    %v311 = vunpack.c.h.b16 %v47
    %v312 = vunpack.c.l.b16 %v48
    %v313 = vunpack.c.h.b16 %v48
    %v314 = vunpack.c.l.b16 %v49
    %v315 = vunpack.c.h.b16 %v49
    %v316 = vunpack.c.l.b16 %v50
    %v317 = vunpack.c.h.b16 %v50
    %v318 = vunpack.c.l.b16 %v51
    %v319 = vunpack.c.h.b16 %v51
    %v320 = vunpack.c.l.b16 %v52
    %v321 = vunpack.c.h.b16 %v52
    %v322 = vunpack.c.l.b16 %v53
    %v323 = vunpack.c.h.b16 %v53
    %v324 = vunpack.c.l.b16 %v54
    %v325 = vunpack.c.h.b16 %v54
    %v326 = vunpack.c.l.b16 %v55
    %v327 = vunpack.c.h.b16 %v55
    %v328 = vunpack.c.l.b16 %v56
    %v329 = vunpack.c.h.b16 %v56
    %v330 = vunpack.c.l.b16 %v57
    %v331 = vunpack.c.h.b16 %v57
    %v332 = vunpack.c.l.b16 %v58
    %v333 = vunpack.c.h.b16 %v58
    %v334 = vunpack.c.l.b16 %v59
    %v335 = vunpack.c.h.b16 %v59
    %v336 = vunpack.c.l.b16 %v60
    %v337 = vunpack.c.h.b16 %v60
    %v338 = vunpack.c.l.b16 %v61
    %v339 = vunpack.c.h.b16 %v61
    %v340 = vunpack.c.l.b16 %v62
    %v341 = vunpack.c.h.b16 %v62
    %v342 = vunpack.c.l.b16 %v63
    %v343 = vunpack.c.h.b16 %v63
    %v344 = vunpack.c.l.b16 %v64
    %v345 = vunpack.c.h.b16 %v64
    %v346 = vunpack.c.l.b16 %v65
    %v347 = vunpack.c.h.b16 %v65
    %v348 = vunpack.c.l.b16 %v66
    %v349 = vunpack.c.h.b16 %v66
    %v350 = vunpack.c.l.b16 %v67
    %v351 = vunpack.c.h.b16 %v67
    %v352 = vunpack.c.l.b16 %v68
    %v353 = vunpack.c.h.b16 %v68
    %v354 = vunpack.c.l.b16 %v69
    %v355 = vunpack.c.h.b16 %v69
    %v356 = vunpack.c.l.b16 %v70
    %v357 = vunpack.c.h.b16 %v70
    %v358 = vunpack.c.l.b16 %v71
    %v359 = vunpack.c.h.b16 %v71
    %v360 = vunpack.c.l.b16 %v72
    %v361 = vunpack.c.h.b16 %v72
    %v362 = vunpack.c.l.b16 %v73
    %v363 = vunpack.c.h.b16 %v73
    %v364 = vunpack.c.l.b16 %v74
    %v365 = vunpack.c.h.b16 %v74
    %v366 = vunpack.c.l.b16 %v75
    %v367 = vunpack.c.h.b16 %v75
    %v368 = vunpack.c.l.b16 %v76
    %v369 = vunpack.c.h.b16 %v76
    %v370 = vunpack.c.l.b16 %v77
    %v371 = vunpack.c.h.b16 %v77
    %v372 = vunpack.c.l.b16 %v78
    %v373 = vunpack.c.h.b16 %v78
    %v374 = vunpack.c.l.b16 %v79
    %v375 = vunpack.c.h.b16 %v79
    %v376 = vunpack.c.l.b16 %v80
    %v377 = vunpack.c.h.b16 %v80
    %v378 = vunpack.c.l.b16 %v81
    %v379 = vunpack.c.h.b16 %v81
    %v380 = vunpack.c.l.b16 %v82
    %v381 = vunpack.c.h.b16 %v82
    %v382 = vunpack.c.l.b16 %v83
    %v383 = vunpack.c.h.b16 %v83
    %v384 = vunpack.c.l.b16 %v84
    %v385 = vunpack.c.h.b16 %v84
    %v386 = vunpack.c.l.b16 %v85
    %v387 = vunpack.c.h.b16 %v85
    %v388 = vunpack.c.l.b16 %v86
    %v389 = vunpack.c.h.b16 %v86
    %v390 = vunpack.c.l.b16 %v87
    %v391 = vunpack.c.h.b16 %v87
    %v392 = vunpack.c.l.b16 %v88
    %v393 = vunpack.c.h.b16 %v88
    %v394 = vunpack.c.l.b16 %v89
    %v395 = vunpack.c.h.b16 %v89
    %v396 = vunpack.c.l.b16 %v90
    %v397 = vunpack.c.h.b16 %v90
    %v398 = vunpack.c.l.b16 %v91
    %v399 = vunpack.c.h.b16 %v91
    %v400 = vunpack.c.l.b16 %v92
    %v401 = vunpack.c.h.b16 %v92
    %v402 = vunpack.c.l.b16 %v93
    %v403 = vunpack.c.h.b16 %v93
    %v404 = vunpack.c.l.b16 %v94
    %v405 = vunpack.c.h.b16 %v94
    %v406 = vunpack.c.l.b16 %v95
    %v407 = vunpack.c.h.b16 %v95
    %v408 = vunpack.c.l.b16 %v96
    %v409 = vunpack.c.h.b16 %v96
    %v410 = vunpack.c.l.b16 %v97
    %v411 = vunpack.c.h.b16 %v97
    %v412 = vunpack.c.l.b16 %v98
    %v413 = vunpack.c.h.b16 %v98
    %v414 = vunpack.c.l.b16 %v99
    %v415 = vunpack.c.h.b16 %v99
    %v416 = vunpack.c.l.b16 %v100
    %v417 = vunpack.c.h.b16 %v100
    %v418 = vunpack.c.l.b16 %v101
    %v419 = vunpack.c.h.b16 %v101
    %v420 = vunpack.c.l.b16 %v102
    %v421 = vunpack.c.h.b16 %v102
    %v422 = vunpack.c.l.b16 %v103
    %v423 = vunpack.c.h.b16 %v103
    %v424 = vunpack.c.l.b16 %v104
    %v425 = vunpack.c.h.b16 %v104
    %v426 = vunpack.c.l.b16 %v105
    %v427 = vunpack.c.h.b16 %v105
    %v428 = vunpack.c.l.b16 %v106
    %v429 = vunpack.c.h.b16 %v106
    %v430 = vunpack.c.l.b16 %v107
    %v431 = vunpack.c.h.b16 %v107
    %v432 = vunpack.c.l.b16 %v108
    %v433 = vunpack.c.h.b16 %v108
    %v434 = vunpack.c.l.b16 %v109
    %v435 = vunpack.c.h.b16 %v109
    %v436 = vunpack.c.l.b16 %v110
    %v437 = vunpack.c.h.b16 %v110
    %v438 = vunpack.c.l.b16 %v111
    %v439 = vunpack.c.h.b16 %v111
    %v440 = vunpack.c.l.b16 %v112
    %v441 = vunpack.c.h.b16 %v112
    %v442 = vunpack.c.l.b16 %v113
    %v443 = vunpack.c.h.b16 %v113
    %v444 = vunpack.c.l.b16 %v114
    %v445 = vunpack.c.h.b16 %v114
    %v446 = vunpack.c.l.b16 %v115
    %v447 = vunpack.c.h.b16 %v115
    %v448 = vunpack.c.l.b16 %v116
    %v449 = vunpack.c.h.b16 %v116
    %v450 = vunpack.c.l.b16 %v117
    %v451 = vunpack.c.h.b16 %v117
    %v452 = vunpack.c.l.b16 %v118
    %v453 = vunpack.c.h.b16 %v118
    %v454 = vunpack.c.l.b16 %v119
    %v455 = vunpack.c.h.b16 %v119
    %v456 = vunpack.c.l.b16 %v120
    %v457 = vunpack.c.h.b16 %v120
    %v458 = vunpack.c.l.b16 %v121
    %v459 = vunpack.c.h.b16 %v121
    %v460 = vunpack.c.l.b16 %v122
    %v461 = vunpack.c.h.b16 %v122
    %v462 = vunpack.c.l.b16 %v123
    %v463 = vunpack.c.h.b16 %v123
    %v464 = vunpack.c.l.b16 %v124
    %v465 = vunpack.c.h.b16 %v124
    %v466 = vunpack.c.l.b16 %v125
    %v467 = vunpack.c.h.b16 %v125
    %v468 = vunpack.c.l.b16 %v126
    %v469 = vunpack.c.h.b16 %v126
    %v470 = vunpack.c.l.b16 %v127
    %v471 = vunpack.c.h.b16 %v127
    %v472 = vunpack.c.l.b16 %v128
    %v473 = vunpack.c.h.b16 %v128
    %v474 = vunpack.c.l.b16 %v129
    %v475 = vunpack.c.h.b16 %v129
    %v476 = vunpack.c.l.b16 %v130
    %v477 = vunpack.c.h.b16 %v130
    %v478 = vunpack.c.l.b16 %v131
    %v479 = vunpack.c.h.b16 %v131
    %v480 = vunpack.c.l.b16 %v132
    %v481 = vunpack.c.h.b16 %v132
    %v482 = vunpack.c.l.b16 %v133
    %v483 = vunpack.c.h.b16 %v133
    %v484 = vunpack.c.l.b16 %v134
    %v485 = vunpack.c.h.b16 %v134
    %v486 = vunpack.c.l.b16 %v135
    %v487 = vunpack.c.h.b16 %v135
    %v488 = vunpack.c.l.b16 %v136
    %v489 = vunpack.c.h.b16 %v136
    %v490 = vunpack.c.l.b16 %v137
    %v491 = vunpack.c.h.b16 %v137
    %v492 = vpack.c.b16 %v302, %v300
    %v493 = vpack.c.b16 %v303, %v301
    %v494 = vpack.c.b16 %v306, %v304
    %v495 = vpack.c.b16 %v307, %v305
    %v496 = vpack.c.b16 %v310, %v308
    %v497 = vpack.c.b16 %v311, %v309
    %v498 = vpack.c.b16 %v314, %v312
    %v499 = vpack.c.b16 %v315, %v313
    %v500 = vpack.c.b16 %v318, %v316
    %v501 = vpack.c.b16 %v319, %v317
    %v502 = vpack.c.b16 %v322, %v320
    %v503 = vpack.c.b16 %v323, %v321
    %v504 = vpack.c.b16 %v326, %v324
    %v505 = vpack.c.b16 %v327, %v325
    %v506 = vpack.c.b16 %v330, %v328
    %v507 = vpack.c.b16 %v331, %v329
    %v508 = vpack.c.b16 %v334, %v332
    %v509 = vpack.c.b16 %v335, %v333
    %v510 = vpack.c.b16 %v338, %v336
    %v511 = vpack.c.b16 %v339, %v337
    %v512 = vpack.c.b16 %v342, %v340
    %v513 = vpack.c.b16 %v343, %v341
    %v514 = vpack.c.b16 %v346, %v344
    %v515 = vpack.c.b16 %v347, %v345
    %v516 = vpack.c.b16 %v350, %v348
    %v517 = vpack.c.b16 %v351, %v349
    %v518 = vpack.c.b16 %v354, %v352
    %v519 = vpack.c.b16 %v355, %v353
    %v520 = vpack.c.b16 %v358, %v356
    %v521 = vpack.c.b16 %v359, %v357
    %v522 = vpack.c.b16 %v362, %v360
    %v523 = vpack.c.b16 %v363, %v361
    %v524 = vpack.c.b16 %v366, %v364
    %v525 = vpack.c.b16 %v367, %v365
    %v526 = vpack.c.b16 %v370, %v368
    %v527 = vpack.c.b16 %v371, %v369
    %v528 = vpack.c.b16 %v374, %v372
    %v529 = vpack.c.b16 %v375, %v373
    %v530 = vpack.c.b16 %v378, %v376
    %v531 = vpack.c.b16 %v379, %v377
    %v532 = vpack.c.b16 %v382, %v380
    %v533 = vpack.c.b16 %v383, %v381
    %v534 = vpack.c.b16 %v386, %v384
    %v535 = vpack.c.b16 %v387, %v385
    %v536 = vpack.c.b16 %v390, %v388
    %v537 = vpack.c.b16 %v391, %v389
    %v538 = vpack.c.b16 %v394, %v392
    %v539 = vpack.c.b16 %v395, %v393
    %v540 = vpack.c.b16 %v398, %v396
    %v541 = vpack.c.b16 %v399, %v397
    %v542 = vpack.c.b16 %v402, %v400
    %v543 = vpack.c.b16 %v403, %v401
    %v544 = vpack.c.b16 %v406, %v404
    %v545 = vpack.c.b16 %v407, %v405
    %v546 = vpack.c.b16 %v410, %v408
    %v547 = vpack.c.b16 %v411, %v409
    %v548 = vpack.c.b16 %v414, %v412
    %v549 = vpack.c.b16 %v415, %v413
    %v550 = vpack.c.b16 %v418, %v416
    %v551 = vpack.c.b16 %v419, %v417
    %v552 = vpack.c.b16 %v422, %v420
    %v553 = vpack.c.b16 %v423, %v421
    %v554 = vpack.c.b16 %v426, %v424
    %v555 = vpack.c.b16 %v427, %v425
    %v556 = vpack.c.b16 %v430, %v428
    %v557 = vpack.c.b16 %v431, %v429
    %v558 = vpack.c.b16 %v434, %v432
    %v559 = vpack.c.b16 %v435, %v433
    %v560 = vpack.c.b16 %v438, %v436
    %v561 = vpack.c.b16 %v439, %v437
    %v562 = vpack.c.b16 %v442, %v440
    %v563 = vpack.c.b16 %v443, %v441
    %v564 = vpack.c.b16 %v446, %v444
    %v565 = vpack.c.b16 %v447, %v445
    %v566 = vpack.c.b16 %v450, %v448
    %v567 = vpack.c.b16 %v451, %v449
    %v568 = vpack.c.b16 %v454, %v452
    %v569 = vpack.c.b16 %v455, %v453
    %v570 = vpack.c.b16 %v458, %v456
    %v571 = vpack.c.b16 %v459, %v457
    %v572 = vpack.c.b16 %v462, %v460
    %v573 = vpack.c.b16 %v463, %v461
    %v574 = vpack.c.b16 %v466, %v464
    %v575 = vpack.c.b16 %v467, %v465
    %v576 = vpack.c.b16 %v470, %v468
    %v577 = vpack.c.b16 %v471, %v469
    %v578 = vpack.c.b16 %v474, %v472
    %v579 = vpack.c.b16 %v475, %v473
    %v580 = vpack.c.b16 %v478, %v476
    %v581 = vpack.c.b16 %v479, %v477
    %v582 = vpack.c.b16 %v482, %v480
    %v583 = vpack.c.b16 %v483, %v481
    %v584 = vpack.c.b16 %v486, %v484
    %v585 = vpack.c.b16 %v487, %v485
    %v586 = vpack.c.b16 %v490, %v488
    %v587 = vpack.c.b16 %v491, %v489
    %684 = vmatprep.subr.bf16.mxu0 %v507
    %685 = vmatpush1.bf16.msra.mxu0 %v506
    %686 = vmatprep.subr.bf16.mxu0 %v505
    %687 = vmatpush1.bf16.msra.mxu0 %v504
    %688 = vmatprep.subr.bf16.mxu0 %v503
    %689 = vmatpush1.bf16.msra.mxu0 %v502
    %690 = vmatprep.subr.bf16.mxu0 %v501
    %691 = vmatpush1.bf16.msra.mxu0 %v500
    %692 = vmatprep.subr.bf16.mxu0 %v499
    %693 = vmatpush1.bf16.msra.mxu0 %v498
    %694 = vmatprep.subr.bf16.mxu0 %v497
    %695 = vmatpush1.bf16.msra.mxu0 %v496
    %696 = vmatprep.subr.bf16.mxu0 %v495
    %697 = vmatpush1.bf16.msra.mxu0 %v494
    %698 = vmatprep.subr.bf16.mxu0 %v493
    %699 = vmatpush1.bf16.msra.mxu0 %v492
    %700 = vmatprep.subr.bf16.mxu0 %v523
    %701 = vmatpush2.bf16.msra.mxu0 %v522
    %702 = vmatprep.subr.bf16.mxu0 %v521
    %703 = vmatpush2.bf16.msra.mxu0 %v520
    %704 = vmatprep.subr.bf16.mxu0 %v519
    %705 = vmatpush2.bf16.msra.mxu0 %v518
    %706 = vmatprep.subr.bf16.mxu0 %v517
    %707 = vmatpush2.bf16.msra.mxu0 %v516
    %708 = vmatprep.subr.bf16.mxu0 %v515
    %709 = vmatpush2.bf16.msra.mxu0 %v514
    %710 = vmatprep.subr.bf16.mxu0 %v513
    %711 = vmatpush2.bf16.msra.mxu0 %v512
    %712 = vmatprep.subr.bf16.mxu0 %v511
    %713 = vmatpush2.bf16.msra.mxu0 %v510
    %714 = vmatprep.subr.bf16.mxu0 %v509
    %715 = vmatpush2.bf16.msra.mxu0 %v508
    %716 = vmatprep.mubr.bf16.mxu0 %v188
    %717 = vmatmul.mubr.bf16.gmra.mxu0 %v174
    %v718 = vpop.f32.mrf.mxu0
    %v719 = vadd.f32 %v143, %v718
    %v720 = vpop.f32.mrf.mxu0
    %v721 = vadd.f32 %v147, %v720
    %v722 = vpop.f32.mrf.mxu0
    %v723 = vpop.f32.mrf.mxu0
    %724 = vdwg.mxu0
    %725 = vmatprep.subr.bf16.mxu0 %v539
    %726 = vmatpush1.bf16.msra.mxu0 %v538
    %727 = vmatprep.subr.bf16.mxu0 %v537
    %728 = vmatpush1.bf16.msra.mxu0 %v536
    %729 = vmatprep.subr.bf16.mxu0 %v535
    %730 = vmatpush1.bf16.msra.mxu0 %v534
    %731 = vmatprep.subr.bf16.mxu0 %v533
    %732 = vmatpush1.bf16.msra.mxu0 %v532
    %733 = vmatprep.subr.bf16.mxu0 %v531
    %734 = vmatpush1.bf16.msra.mxu0 %v530
    %735 = vmatprep.subr.bf16.mxu0 %v529
    %736 = vmatpush1.bf16.msra.mxu0 %v528
    %737 = vmatprep.subr.bf16.mxu0 %v527
    %738 = vmatpush1.bf16.msra.mxu0 %v526
    %739 = vmatprep.subr.bf16.mxu0 %v525
    %740 = vmatpush1.bf16.msra.mxu0 %v524
    %741 = vmatprep.subr.bf16.mxu0 %v555
    %742 = vmatpush2.bf16.msra.mxu0 %v554
    %743 = vmatprep.subr.bf16.mxu0 %v553
    %744 = vmatpush2.bf16.msra.mxu0 %v552
    %745 = vmatprep.subr.bf16.mxu0 %v551
    %746 = vmatpush2.bf16.msra.mxu0 %v550
    %747 = vmatprep.subr.bf16.mxu0 %v549
    %748 = vmatpush2.bf16.msra.mxu0 %v548
    %749 = vmatprep.subr.bf16.mxu0 %v547
    %750 = vmatpush2.bf16.msra.mxu0 %v546
    %751 = vmatprep.subr.bf16.mxu0 %v545
    %752 = vmatpush2.bf16.msra.mxu0 %v544
    %753 = vmatprep.subr.bf16.mxu0 %v543
    %754 = vmatpush2.bf16.msra.mxu0 %v542
    %755 = vmatprep.subr.bf16.mxu0 %v541
    %756 = vmatpush2.bf16.msra.mxu0 %v540
    %757 = vmatprep.mubr.bf16.mxu0 %v197
    %758 = vmatmul.mubr.bf16.gmra.mxu0 %v196
    %v759 = vpop.f32.mrf.mxu0
    %v760 = vadd.f32 %v719, %v759
    %v761 = vpop.f32.mrf.mxu0
    %v762 = vadd.f32 %v721, %v761
    %v763 = vpop.f32.mrf.mxu0
    %v764 = vpop.f32.mrf.mxu0
    %765 = vdwg.mxu0
    %766 = vmatprep.subr.bf16.mxu0 %v571
    %767 = vmatpush1.bf16.msra.mxu0 %v570
    %768 = vmatprep.subr.bf16.mxu0 %v569
    %769 = vmatpush1.bf16.msra.mxu0 %v568
    %770 = vmatprep.subr.bf16.mxu0 %v567
    %771 = vmatpush1.bf16.msra.mxu0 %v566
    %772 = vmatprep.subr.bf16.mxu0 %v565
    %773 = vmatpush1.bf16.msra.mxu0 %v564
    %774 = vmatprep.subr.bf16.mxu0 %v563
    %775 = vmatpush1.bf16.msra.mxu0 %v562
    %776 = vmatprep.subr.bf16.mxu0 %v561
    %777 = vmatpush1.bf16.msra.mxu0 %v560
    %778 = vmatprep.subr.bf16.mxu0 %v559
    %779 = vmatpush1.bf16.msra.mxu0 %v558
    %780 = vmatprep.subr.bf16.mxu0 %v557
    %781 = vmatpush1.bf16.msra.mxu0 %v556
    %782 = vmatprep.subr.bf16.mxu0 %v587
    %783 = vmatpush2.bf16.msra.mxu0 %v586
    %784 = vmatprep.subr.bf16.mxu0 %v585
    %785 = vmatpush2.bf16.msra.mxu0 %v584
    %786 = vmatprep.subr.bf16.mxu0 %v583
    %787 = vmatpush2.bf16.msra.mxu0 %v582
    %788 = vmatprep.subr.bf16.mxu0 %v581
    %789 = vmatpush2.bf16.msra.mxu0 %v580
    %790 = vmatprep.subr.bf16.mxu0 %v579
    %791 = vmatpush2.bf16.msra.mxu0 %v578
    %792 = vmatprep.subr.bf16.mxu0 %v577
    %793 = vmatpush2.bf16.msra.mxu0 %v576
    %794 = vmatprep.subr.bf16.mxu0 %v575
    %795 = vmatpush2.bf16.msra.mxu0 %v574
    %796 = vmatprep.subr.bf16.mxu0 %v573
    %797 = vmatpush2.bf16.msra.mxu0 %v572
    %798 = vmatprep.mubr.bf16.mxu0 %v195
    %799 = vmatmul.mubr.bf16.gmra.mxu0 %v181
    %v800 = vpop.f32.mrf.mxu0
    %v801 = vadd.f32 %v760, %v800
    %v802 = vpop.f32.mrf.mxu0
    %v803 = vadd.f32 %v762, %v802
    %v804 = vpop.f32.mrf.mxu0
    %v805 = vpop.f32.mrf.mxu0
    %806 = vdwg.mxu0
    %v807 = vmax.f32 %v801, 0.0
    %v808 = vmax.f32 %v803, 0.0
    %v809 = vld [vmem:[%s1] sm:$0x3f]
    %v810 = vld [vmem:[%s1 + $0x8] sm:$0x3f]
    %v811 = vld [vmem:[%s1 + $0x10] sm:$0x3f]
    %v812 = vld [vmem:[%s1 + $0x18] sm:$0x3f]
    %vm813 = vcmask 1045504
    %v814 = vsel %vm813, %v809, 0.0
    %v815 = vrot.slane %v814, 4
    %v816 = vadd.f32 %v814, %v815
    %v817 = vrot.slane %v816, 2
    %v818 = vadd.f32 %v816, %v817
    %v819 = vrot.slane %v818, 1
    %v820 = vadd.f32 %v818, %v819
    %vm821 = vcmask 586752
    %v822 = vsel %vm821, %v810, 0.0
    %v823 = vrot.slane %v822, 4
    %v824 = vadd.f32 %v822, %v823
    %v825 = vrot.slane %v824, 2
    %v826 = vadd.f32 %v824, %v825
    %v827 = vrot.slane %v826, 1
    %v828 = vadd.f32 %v826, %v827
    %v829 = vsel %vm813, %v811, 0.0
    %v830 = vrot.slane %v829, 4
    %v831 = vadd.f32 %v829, %v830
    %v832 = vrot.slane %v831, 2
    %v833 = vadd.f32 %v831, %v832
    %v834 = vrot.slane %v833, 1
    %v835 = vadd.f32 %v833, %v834
    %v836 = vsel %vm821, %v812, 0.0
    %v837 = vrot.slane %v836, 4
    %v838 = vadd.f32 %v836, %v837
    %v839 = vrot.slane %v838, 2
    %v840 = vadd.f32 %v838, %v839
    %v841 = vrot.slane %v840, 1
    %v842 = vadd.f32 %v840, %v841
    %v843 = vrcp.pop 6.0
    %v844 = vmul.f32 %v820, %v843
    %v845 = vmul.f32 %v828, %v843
    %v846 = vmul.f32 %v835, %v843
    %v847 = vmul.f32 %v842, %v843
    %v848 = vld [vmem:[%s2] sm:$0x3f]
    %v849 = vld [vmem:[%s2 + $0x8] sm:$0x3f]
    %v850 = vld [vmem:[%s2 + $0x10] sm:$0x3f]
    %v851 = vld [vmem:[%s2 + $0x18] sm:$0x3f]
    %v852 = vsel %vm813, %v848, 0.0
    %v853 = vrot.slane %v852, 4
    %v854 = vadd.f32 %v852, %v853
    %v855 = vrot.slane %v854, 2
    %v856 = vadd.f32 %v854, %v855
    %v857 = vrot.slane %v856, 1
    %v858 = vadd.f32 %v856, %v857
    %v859 = vsel %vm821, %v849, 0.0
    %v860 = vrot.slane %v859, 4
    %v861 = vadd.f32 %v859, %v860
    %v862 = vrot.slane %v861, 2
    %v863 = vadd.f32 %v861, %v862
    %v864 = vrot.slane %v863, 1
    %v865 = vadd.f32 %v863, %v864
    %v866 = vsel %vm813, %v850, 0.0
    %v867 = vrot.slane %v866, 4
    %v868 = vadd.f32 %v866, %v867
    %v869 = vrot.slane %v868, 2
    %v870 = vadd.f32 %v868, %v869
    %v871 = vrot.slane %v870, 1
    %v872 = vadd.f32 %v870, %v871
    %v873 = vsel %vm821, %v851, 0.0
    %v874 = vrot.slane %v873, 4
    %v875 = vadd.f32 %v873, %v874
    %v876 = vrot.slane %v875, 2
    %v877 = vadd.f32 %v875, %v876
    %v878 = vrot.slane %v877, 1
    %v879 = vadd.f32 %v877, %v878
    %v880 = vmul.f32 %v858, %v843
    %v881 = vmul.f32 %v865, %v843
    %v882 = vmul.f32 %v872, %v843
    %v883 = vmul.f32 %v879, %v843
    %v884 = vld [vmem:[%s5] ss:$4 sm:$0x3]
    %v886 = vlaneseq
    %v887 = vshrl.u32 %v886, 7
    %v888 = vsub.s32 0, %v887
    %v889 = vrot.slane %v884, %v888
    %v890 = vlaneseq
    %v891 = vshrl.u32 %v890, 7
    %v892 = vsub.s32 1, %v891
    %v893 = vrot.slane %v884, %v892
    %v896 = vmul.f32 %v807, %v889
    %v897 = vmul.f32 %v808, %v893
    %vm898 = vcmask 1041408
    %v899 = vsel %vm898, %v896, 0.0
    %v900 = vsel %vm898, %v897, 0.0
    %v901 = vadd.f32 %v899, %v900
    %902 = vadd.xlane.f32.xlu0 %v901
    %v903 = vpop.xlane.xlu0 %902
    %s904 = scalar_lea.vmem %s5, 1
    %v905 = vld [vmem:[%s904] ss:$4 sm:$0x3]
    %v907 = vlaneseq
    %v908 = vshrl.u32 %v907, 7
    %v909 = vsub.s32 0, %v908
    %v910 = vrot.slane %v905, %v909
    %v911 = vlaneseq
    %v912 = vshrl.u32 %v911, 7
    %v913 = vsub.s32 1, %v912
    %v914 = vrot.slane %v905, %v913
    %v917 = vmul.f32 %v844, %v910
    %v918 = vmul.f32 %v845, %v914
    %v919 = vmul.f32 %v846, %v910
    %v920 = vmul.f32 %v847, %v914
    %v925 = vrot.slane %v919, 7
    %vm926 = vcmask 1041409
    %v927 = vsel %vm926, %v925, %v917
    %v928 = vrot.slane %v920, 7
    %v929 = vsel %vm926, %v928, %v918
    %v932 = vsel %vm898, %v927, 0.0
    %vm933 = vcmask 582656
    %v934 = vsel %vm933, %v929, 0.0
    %v935 = vadd.f32 %v932, %v934
    %936 = vadd.xlane.f32.xlu0 %v935
    %v937 = vpop.xlane.xlu0 %936
    %v938 = vadd.f32 %v903, %v937
    %s939 = scalar_lea.vmem %s5, 2
    %v940 = vld [vmem:[%s939] ss:$4 sm:$0x3]
    %v942 = vlaneseq
    %v943 = vshrl.u32 %v942, 7
    %v944 = vsub.s32 0, %v943
    %v945 = vrot.slane %v940, %v944
    %v946 = vlaneseq
    %v947 = vshrl.u32 %v946, 7
    %v948 = vsub.s32 1, %v947
    %v949 = vrot.slane %v940, %v948
    %v952 = vmul.f32 %v880, %v945
    %v953 = vmul.f32 %v881, %v949
    %v954 = vmul.f32 %v882, %v945
    %v955 = vmul.f32 %v883, %v949
    %v960 = vrot.slane %v954, 7
    %v961 = vsel %vm926, %v960, %v952
    %v962 = vrot.slane %v955, 7
    %v963 = vsel %vm926, %v962, %v953
    %v966 = vsel %vm898, %v961, 0.0
    %v967 = vsel %vm933, %v963, 0.0
    %v968 = vadd.f32 %v966, %v967
    %969 = vadd.xlane.f32.xlu0 %v968
    %v970 = vpop.xlane.xlu0 %969
    %v971 = vadd.f32 %v938, %v970
    %s972 = sld [smem:[#allocation2]]
    %v973 = vstv %s972
    %v974 = vadd.f32 %v971, %v973
    %v975 = vxor.u32 %v974, 2147483648
    %v976 = vmul.f32 %v975, 1.442695
    %v977 = vpow.pop %v976
    %v978 = vadd.f32 %v977, 1.0
    %v979 = vrcp.pop %v978
    %v980 = vmul.f32 1.0, %v979
    %vm981 = vcmask 1024
    %982 = vst.msk [vmem:[%s7] sm:$0x3] %vm981, %v980
    // Predicated region
    $region34: #{similarity_forward.1} parent=1 // pred_check
      _
    $region35: #{similarity_forward.1} parent=1 // pred_check_branch
      %984 = sbr.rel (0) target = $region37
    $region36: #{similarity_forward.1} parent=1 // pred_region
      _
    $region37: #{similarity_forward.1} parent=1 // pred_fallthru
      _
    // Predicated region
    $region38: #{similarity_forward.1} parent=1 // pred_check
      _
    $region39: #{similarity_forward.1} parent=1 // pred_check_branch
      %986 = sbr.rel (0) target = $region41
    $region40: #{similarity_forward.1} parent=1 // pred_region
      _
    $region41: #{similarity_forward.1} parent=1 // pred_fallthru
      _
    %987 = vsyncpa [#allocation4], 1

</llo_original>
